<compile_context>
chip_gen: v7x
topology: tpu7x:2x2x1
jax: 0.10.0
libtpu: 0.0.40
codegen_flags: <defaults>
</compile_context>

<pallas_src>
import functools

import jax
import jax.numpy as jnp
from jax.experimental import pallas as pl
from jax.experimental.pallas import tpu as pltpu


def _sse_kernel(x_ref, w1t_ref, b1_ref, w2t_ref, b2_ref, out_ref, *, inv_t):
    # x_ref/out_ref: (tb, N, T)  ; w*t_ref: (N, N) pre-transposed f32 ; b*: (1, N) f32
    x = x_ref[...]                                          # native dtype, no slab upcast

    # Squeeze: mean over the TRUE time length (block dim == T, so no masking needed).
    m = jnp.sum(x, axis=-1, dtype=jnp.float32) * inv_t      # (tb, N) f32

    # Excitation MLP (weights already transposed and f32 in the wrapper).
    h = jax.nn.sigmoid(
        jnp.dot(m, w1t_ref[...], preferred_element_type=jnp.float32) + b1_ref[...])
    h = jax.nn.sigmoid(
        jnp.dot(h, w2t_ref[...], preferred_element_type=jnp.float32) + b2_ref[...])

    # Re-weight: broadcast the gate over the time axis in native dtype.
    gate = h.astype(x.dtype)[:, :, None]                    # (tb, N, 1)
    out_ref[...] = (x * gate).astype(out_ref.dtype)


def _vmem_capacity_bytes():
    # 64 MiB per TC on v7x, 128 MiB on v5e/v6e. Conservative fallback = 64 MiB.
    try:
        return int(pltpu.get_tpu_info().vmem_capacity_bytes)
    except Exception:
        return 64 << 20


def _num_tensorcores():
    # Multi-TC ("megacore") parts want >= 2 grid steps so dimension_semantics
    # ("parallel",) can shard the grid across cores; single-TC v5e/v6e should
    # not pay smaller tiles / extra step overhead for zero benefit.
    try:
        kind = jax.devices()[0].device_kind.lower()
    except Exception:
        return 2
    if "lite" in kind or "v5e" in kind or "v6e" in kind:
        return 1          # TPU v5e / v6e: single TensorCore per chip
    return 2              # v4 / v5p / v7x and unknown parts: assume multi-TC


def spatial_squeeze_excitation(x, w1, b1, w2, b2, *, block_batch=None):
    B, N, T = x.shape
    itemsize = jnp.dtype(x.dtype).itemsize

    # ---- effective VMEM footprint of one batch row of a (tb, N, T) block ----
    # Narrow dtypes pack along sublanes: min second-minor tile 8 (f32) /
    # 16 (bf16) / 32 (int8); lanes pad to 128. Fold that into the sizing.
    min_sublane = {4: 8, 2: 16, 1: 32}.get(itemsize, 8)
    pad_n = pl.cdiv(N, min_sublane) * min_sublane
    pad_t = pl.cdiv(T, 128) * 128
    row_vmem_bytes = pad_n * pad_t * itemsize

    # ---- generation-aware VMEM budget and block sizing ----------------------
    vmem_cap = _vmem_capacity_bytes()
    # ~50% of capacity for the pipeline: 32 MiB on v7x, 64 MiB on v5e/v6e.
    vmem_limit = min(int(vmem_cap * 0.9), max(vmem_cap // 2, 16 << 20))
    # Pipeline holds 2 buffers each for the input and output block (4 blocks),
    # plus a few MiB of compiler headroom.
    block_target = max(1 << 20, (vmem_limit - (4 << 20)) // 4)

    if block_batch is None:
        tb = max(1, min(B, block_target // max(1, row_vmem_bytes)))
        if _num_tensorcores() >= 2 and B >= 2:
            # Keep >= 2 grid steps only where there are >= 2 TensorCores.
            tb = max(1, min(tb, pl.cdiv(B, 2)))
    else:
        tb = max(1, min(B, int(block_batch)))   # test hook (forces ragged tail)

    n_steps = pl.cdiv(B, tb)   # ragged last block: OOB reads are garbage in
                               # independent batch rows whose writes are masked.

    block_vmem_bytes = tb * row_vmem_bytes
    weight_bytes = 2 * N * N * 4 + 2 * N * 4
    vmem_limit = int(min(int(vmem_cap * 0.9),
                         max(vmem_limit,
                             4 * block_vmem_bytes + weight_bytes + (2 << 20))))

    # Hoist transposes / upcasts out of the per-step hot path.
    w1t = jnp.asarray(w1.T, jnp.float32)                    # (N, N), y = m @ w1.T
    w2t = jnp.asarray(w2.T, jnp.float32)
    b1r = jnp.asarray(b1, jnp.float32).reshape(1, N)
    b2r = jnp.asarray(b2, jnp.float32).reshape(1, N)

    kernel = functools.partial(_sse_kernel, inv_t=float(1.0 / T))

    cost = pl.CostEstimate(
        flops=int(4 * B * N * N + 2 * B * N * T),
        transcendentals=int(2 * B * N),
        bytes_accessed=int(2 * B * N * T * itemsize + weight_bytes),
    )

    return pl.pallas_call(
        kernel,
        out_shape=jax.ShapeDtypeStruct((B, N, T), x.dtype),
        grid_spec=pltpu.PrefetchScalarGridSpec(
            num_scalar_prefetch=0,
            grid=(n_steps,),
            in_specs=[
                pl.BlockSpec((tb, N, T), lambda i: (i, 0, 0)),
                pl.BlockSpec((N, N), lambda i: (0, 0)),
                pl.BlockSpec((1, N), lambda i: (0, 0)),
                pl.BlockSpec((N, N), lambda i: (0, 0)),
                pl.BlockSpec((1, N), lambda i: (0, 0)),
            ],
            out_specs=pl.BlockSpec((tb, N, T), lambda i: (i, 0, 0)),
        ),
        compiler_params=pltpu.CompilerParams(
            dimension_semantics=("parallel",),
            vmem_limit_bytes=vmem_limit,
        ),
        cost_estimate=cost,
    )(x, w1t, b1r, w2t, b2r)


def _reference(x, w1, b1, w2, b2):
    xf = jnp.mean(x.astype(jnp.float32), axis=-1)
    xf = jax.nn.sigmoid(xf @ jnp.asarray(w1, jnp.float32).T + jnp.asarray(b1, jnp.float32))
    xf = jax.nn.sigmoid(xf @ jnp.asarray(w2, jnp.float32).T + jnp.asarray(b2, jnp.float32))
    return x * xf.astype(x.dtype)[:, :, None]


if __name__ == "__main__":
    key = jax.random.PRNGKey(0)

    def make_case(key, B, N, T, dtype=jnp.float32):
        kx, kw1, kb1, kw2, kb2 = jax.random.split(key, 5)
        x = jax.random.normal(kx, (B, N, T), dtype=jnp.float32).astype(dtype)
        bound = 1.0 / (N ** 0.5)  # nn.Linear default init range
        w1 = jax.random.uniform(kw1, (N, N), jnp.float32, -bound, bound)
        b1 = jax.random.uniform(kb1, (N,), jnp.float32, -bound, bound)
        w2 = jax.random.uniform(kw2, (N, N), jnp.float32, -bound, bound)
        b2 = jax.random.uniform(kb2, (N,), jnp.float32, -bound, bound)
        return x, w1, b1, w2, b2

    k1, k2, k3 = jax.random.split(key, 3)

    # Case 1: basic f32, B=2, N=8, T=16 (T < 128 -> masked lane-tail store, no padding pass).
    x, w1, b1, w2, b2 = make_case(k1, B=2, N=8, T=16)
    out = spatial_squeeze_excitation(x, w1, b1, w2, b2)
    jax.block_until_ready(out)
    ref = _reference(x, w1, b1, w2, b2)
    assert out.shape == x.shape and out.dtype == x.dtype
    assert jnp.allclose(out, ref, atol=1e-5, rtol=1e-5), "mismatch vs reference (case 1)"

    # Case 2: ragged batch grid (B % tb != 0 forced via block_batch) and T not a
    # multiple of 128 — verifies OOB rows in the last block are fully masked.
    x, w1, b1, w2, b2 = make_case(k2, B=3, N=8, T=40)
    out = spatial_squeeze_excitation(x, w1, b1, w2, b2, block_batch=2)
    jax.block_until_ready(out)
    ref = _reference(x, w1, b1, w2, b2)
    assert jnp.allclose(out, ref, atol=1e-5, rtol=1e-5), "mismatch vs reference (case 2)"

    # Case 3: bf16 activations (sublane-packing factor path) + ragged batch tail.
    x, w1, b1, w2, b2 = make_case(k3, B=5, N=8, T=24, dtype=jnp.bfloat16)
    out = spatial_squeeze_excitation(x, w1, b1, w2, b2, block_batch=2)
    jax.block_until_ready(out)
    ref = _reference(x, w1, b1, w2, b2)
    assert out.dtype == jnp.bfloat16
    assert jnp.allclose(out.astype(jnp.float32), ref.astype(jnp.float32),
                        atol=5e-2, rtol=5e-2), "mismatch vs reference (case 3, bf16)"

    print("KERNEL_OK")
</pallas_src>

<mosaic_0001>
module attributes {stable_mosaic.version = 11 : i64} {
  func.func @_sse_kernel(%arg0: i32, %arg1: memref<1x8x16xf32, #tpu.memory_space<vmem>>, %arg2: memref<8x8xf32, #tpu.memory_space<vmem>>, %arg3: memref<1x8xf32, #tpu.memory_space<vmem>>, %arg4: memref<8x8xf32, #tpu.memory_space<vmem>>, %arg5: memref<1x8xf32, #tpu.memory_space<vmem>>, %arg6: memref<1x8x16xf32, #tpu.memory_space<vmem>>) attributes {dimension_semantics = [#tpu.dimension_semantics<parallel>], iteration_bounds = array<i64: 2>, scalar_prefetch = 0 : i64, scratch_operands = 0 : i64, tpu.core_type = #tpu.core_type<tc>, window_params = [{transform_indices = @transform_0, window_bounds = array<i64: 1, 8, 16>}, {pipeline_mode = #tpu.pipeline_mode<synchronous>, transform_indices = @transform_1, window_bounds = array<i64: 8, 8>}, {pipeline_mode = #tpu.pipeline_mode<synchronous>, transform_indices = @transform_2, window_bounds = array<i64: 1, 8>}, {pipeline_mode = #tpu.pipeline_mode<synchronous>, transform_indices = @transform_3, window_bounds = array<i64: 8, 8>}, {pipeline_mode = #tpu.pipeline_mode<synchronous>, transform_indices = @transform_4, window_bounds = array<i64: 1, 8>}, {transform_indices = @transform_5, window_bounds = array<i64: 1, 8, 16>}]} {
    %c0 = arith.constant 0 : index
    %c0_0 = arith.constant 0 : index
    %c0_1 = arith.constant 0 : index
    %0 = vector.load %arg1[%c0, %c0_0, %c0_1] : memref<1x8x16xf32, #tpu.memory_space<vmem>>, vector<1x8x16xf32>
    %cst = arith.constant dense<0.000000e+00> : vector<1x8xf32>
    %1 = vector.multi_reduction <add>, %0, %cst [2] : vector<1x8x16xf32> to vector<1x8xf32>
    %cst_2 = arith.constant 6.250000e-02 : f32
    %2 = vector.broadcast %cst_2 : f32 to vector<1x8xf32>
    %3 = arith.mulf %1, %2 : vector<1x8xf32>
    %c0_3 = arith.constant 0 : index
    %c0_4 = arith.constant 0 : index
    %4 = vector.load %arg2[%c0_3, %c0_4] : memref<8x8xf32, #tpu.memory_space<vmem>>, vector<8x8xf32>
    %cst_5 = arith.constant dense<0.000000e+00> : vector<1x8xf32>
    %5 = tpu.matmul %3, %4, %cst_5 {dimension_numbers = #tpu.dot_dimension_numbers<[1], [0], [0], [1], [0, 0, 1, 1], [], []>} : vector<1x8xf32>, vector<8x8xf32>, vector<1x8xf32> -> vector<1x8xf32>
    %c0_6 = arith.constant 0 : index
    %c0_7 = arith.constant 0 : index
    %6 = vector.load %arg3[%c0_6, %c0_7] : memref<1x8xf32, #tpu.memory_space<vmem>>, vector<1x8xf32>
    %7 = arith.addf %5, %6 : vector<1x8xf32>
    %8 = arith.negf %7 : vector<1x8xf32>
    %9 = math.exp %8 : vector<1x8xf32>
    %cst_8 = arith.constant 1.000000e+00 : f32
    %10 = vector.broadcast %cst_8 : f32 to vector<1x8xf32>
    %11 = arith.addf %10, %9 : vector<1x8xf32>
    %12 = arith.divf %10, %11 : vector<1x8xf32>
    %c0_9 = arith.constant 0 : index
    %c0_10 = arith.constant 0 : index
    %13 = vector.load %arg4[%c0_9, %c0_10] : memref<8x8xf32, #tpu.memory_space<vmem>>, vector<8x8xf32>
    %cst_11 = arith.constant dense<0.000000e+00> : vector<1x8xf32>
    %14 = tpu.matmul %12, %13, %cst_11 {dimension_numbers = #tpu.dot_dimension_numbers<[1], [0], [0], [1], [0, 0, 1, 1], [], []>} : vector<1x8xf32>, vector<8x8xf32>, vector<1x8xf32> -> vector<1x8xf32>
    %c0_12 = arith.constant 0 : index
    %c0_13 = arith.constant 0 : index
    %15 = vector.load %arg5[%c0_12, %c0_13] : memref<1x8xf32, #tpu.memory_space<vmem>>, vector<1x8xf32>
    %16 = arith.addf %14, %15 : vector<1x8xf32>
    %17 = arith.negf %16 : vector<1x8xf32>
    %18 = math.exp %17 : vector<1x8xf32>
    %cst_14 = arith.constant 1.000000e+00 : f32
    %19 = vector.broadcast %cst_14 : f32 to vector<1x8xf32>
    %20 = arith.addf %19, %18 : vector<1x8xf32>
    %21 = arith.divf %19, %20 : vector<1x8xf32>
    %22 = vector.shape_cast %21 : vector<1x8xf32> to vector<1x8x1xf32>
    %23 = vector.broadcast %22 : vector<1x8x1xf32> to vector<1x8x16xf32>
    %24 = arith.mulf %0, %23 : vector<1x8x16xf32>
    %c0_15 = arith.constant 0 : index
    %c0_16 = arith.constant 0 : index
    %c0_17 = arith.constant 0 : index
    %25 = vector.load %arg6[%c0_15, %c0_16, %c0_17] : memref<1x8x16xf32, #tpu.memory_space<vmem>>, vector<1x8x16xf32>
    tpu.vector_store %arg6[%c0_15, %c0_16, %c0_17], %24 {strides = array<i32>} : memref<1x8x16xf32, #tpu.memory_space<vmem>>, vector<1x8x16xf32>,
    return
  }
  func.func @transform_0(%arg0: i32) -> (i32, i32, i32) {
    %c0_i32 = arith.constant 0 : i32
    %c0_i32_0 = arith.constant 0 : i32
    %c0_i32_1 = arith.constant 0 : i32
    return %arg0, %c0_i32, %c0_i32_0 : i32, i32, i32
  }
  func.func @transform_1(%arg0: i32) -> (i32, i32) {
    %c0_i32 = arith.constant 0 : i32
    %c0_i32_0 = arith.constant 0 : i32
    %c0_i32_1 = arith.constant 0 : i32
    return %c0_i32, %c0_i32_0 : i32, i32
  }
  func.func @transform_2(%arg0: i32) -> (i32, i32) {
    %c0_i32 = arith.constant 0 : i32
    %c0_i32_0 = arith.constant 0 : i32
    %c0_i32_1 = arith.constant 0 : i32
    return %c0_i32, %c0_i32_0 : i32, i32
  }
  func.func @transform_3(%arg0: i32) -> (i32, i32) {
    %c0_i32 = arith.constant 0 : i32
    %c0_i32_0 = arith.constant 0 : i32
    %c0_i32_1 = arith.constant 0 : i32
    return %c0_i32, %c0_i32_0 : i32, i32
  }
  func.func @transform_4(%arg0: i32) -> (i32, i32) {
    %c0_i32 = arith.constant 0 : i32
    %c0_i32_0 = arith.constant 0 : i32
    %c0_i32_1 = arith.constant 0 : i32
    return %c0_i32, %c0_i32_0 : i32, i32
  }
  func.func @transform_5(%arg0: i32) -> (i32, i32, i32) {
    %c0_i32 = arith.constant 0 : i32
    %c0_i32_0 = arith.constant 0 : i32
    %c0_i32_1 = arith.constant 0 : i32
    return %arg0, %c0_i32, %c0_i32_0 : i32, i32, i32
  }
}

</mosaic_0001>

<llo_original>
// kernel: tpu_custom_call.1
$region0: #{tpu_custom_call.1}
  #allocation0 [shape = 'u32[]', space=smem, size = 0x4, offset = 0x4, fixed_abs, tag = 'smem constant byte address 0x4 - core index']
  #allocation1 [shape = 'u32[144,128]{1,0:T(1,128)}', space=vmem, size = 0x12000, scoped, tag = 'internal scratch']
  %s0 = inlined_call_operand.hbm [shape: f32[2,8,16], index: 0, kind: input, shape index: {}]
  %s1 = inlined_call_operand.hbm [shape: f32[8,8], index: 1, kind: input, shape index: {}]
  %s2 = inlined_call_operand.vmem [shape: f32[1,8], index: 2, kind: input, shape index: {}]
  %s3 = inlined_call_operand.vmem [shape: f32[8,8], index: 3, kind: input, shape index: {}]
  %s4 = inlined_call_operand.vmem [shape: f32[1,8], index: 4, kind: input, shape index: {}]
  %s5 = inlined_call_operand.hbm [shape: f32[2,8,16], index: 5, kind: output, shape index: {}]
  %s6 = sld [smem:[#allocation0]]
  $region61: #{tpu_custom_call.1} parent=0
    _
  %s8 = ssub.s32 1, %s6
  %s9 = scalar_select 0, %s8, %s6
  $region1: #{tpu_custom_call.1} parent=0
    #allocation2 [shape = 'u8[8192]{0}', space=vmem, size = 0x2000, scoped, tag = 'input window, operand 0']
    #allocation3 [shape = 's32[2]{0}', space=sflag, size = 0x8, scoped, tag = 'scoped memory for tpu_custom_call.1']
    #allocation4 [shape = 's32[2]{0}', space=sflag, size = 0x8, scoped, tag = 'scoped memory for tpu_custom_call.1']
    #allocation5 [shape = 'u8[4096]{0}', space=vmem, size = 0x1000, scoped, tag = 'input window, operand 1, single buffered']
    #allocation6 [shape = 's32[1]{0}', space=sflag, size = 0x4, scoped, tag = 'scoped memory for tpu_custom_call.1']
    #allocation7 [shape = 'u8[8192]{0}', space=vmem, size = 0x2000, scoped, tag = 'output window, operand 0']
    %10 = vsyncpa [#allocation3], 0
    %s11 = scalar_lea.sflag [#allocation3], 1
    %12 = vsyncpa %s11, 0
    %13 = vsyncpa [#allocation6], 0
    %14 = vsyncpa [#allocation4], 0
    %s15 = scalar_lea.sflag [#allocation4], 1
    %16 = vsyncpa %s15, 0
    loop: start=0, step=1, limit=4
    $region2: #{tpu_custom_call.1} parent=1 // loop_pre_header
      _
    $region3: #{tpu_custom_call.1} parent=1 // loop_header
      %s18 = sphi 0, %s22
      %p19 = scmp.ge.s32.totalorder %s18, 4
      %s28 = sphi 0, %s30
      %s31 = sphi 0, %s28
      %s32 = sphi 0, %s31
      %s48 = sphi 0, %s32
      %s52 = sphi 0, %s52
      %s54 = sphi 0, %s52
      %s55 = sphi 0, %s54
      %s69 = sphi 0, %s55
      %s73 = sphi 0, %s73
      %s75 = sphi 0, %s73
      %s76 = sphi 0, %s75
      %s90 = sphi 0, %s76
      %s94 = sphi 0, %s94
      %s96 = sphi 0, %s94
      %s97 = sphi 0, %s96
      %s111 = sphi 0, %s97
      %s115 = sphi 0, %s115
      %s117 = sphi 0, %s115
      %s118 = sphi 0, %s117
      %s132 = sphi 0, %s118
      %s138 = sphi 0, %s140
      %s141 = sphi 0, %s138
      %s142 = sphi 0, %s141
      %s158 = sphi 0, %s142
    $region4: #{tpu_custom_call.1} parent=1 // loop_header_branch
      %21 = sbr.rel (%p19) target = $region8
    $region5: #{tpu_custom_call.1} parent=1 // loop_body
      %s23 = ssub.s32 %s18, 1
      %s24 = ssub.s32 %s18, 2
      %s25 = sadd.s32 %s18, 1
      %s26 = ssub.s32 %s18, %s25
      %p27 = scmp.eq.s32.totalorder %s26, 0
      %s29 = sadd.s32 %s28, 1
      %s30 = scalar_select %p27, %s28, %s29
      %p33 = pneg %p27
      %p34 = scmp.eq.s32.totalorder %s18, 1
      %p35 = por %p33, %p34
      %p36 = scmp.ne.s32.totalorder %s28, %s31
      %p37 = scmp.eq.s32.totalorder %s18, 0
      %p38 = por %p36, %p37
      %p39 = scmp.ne.s32.totalorder %s28, %s31
      %p40 = scmp.eq.s32.totalorder %s23, 1
      %p41 = por %p39, %p40
      %p42 = scmp.ne.s32.totalorder %s31, %s32
      %p43 = scmp.eq.s32.totalorder %s23, 0
      %p44 = por %p42, %p43
      %p45 = scmp.ne.s32.totalorder %s31, %s32
      %p46 = scmp.eq.s32.totalorder %s24, 1
      %p47 = por %p45, %p46
      %p49 = scmp.ne.s32.totalorder %s32, %s48
      %p50 = scmp.eq.s32.totalorder %s24, 0
      %p51 = por %p49, %p50
      %s53 = sadd.s32 %s52, 1
      %p56 = scmp.eq.s32.totalorder %s18, 1
      %p57 = scmp.ne.s32.totalorder %s52, %s54
      %p58 = scmp.eq.s32.totalorder %s18, 0
      %p59 = por %p57, %p58
      %p60 = scmp.ne.s32.totalorder %s52, %s54
      %p61 = scmp.eq.s32.totalorder %s23, 1
      %p62 = por %p60, %p61
      %p63 = scmp.ne.s32.totalorder %s54, %s55
      %p64 = scmp.eq.s32.totalorder %s23, 0
      %p65 = por %p63, %p64
      %p66 = scmp.ne.s32.totalorder %s54, %s55
      %p67 = scmp.eq.s32.totalorder %s24, 1
      %p68 = por %p66, %p67
      %p70 = scmp.ne.s32.totalorder %s55, %s69
      %p71 = scmp.eq.s32.totalorder %s24, 0
      %p72 = por %p70, %p71
      %s74 = sadd.s32 %s73, 1
      %p77 = scmp.eq.s32.totalorder %s18, 1
      %p78 = scmp.ne.s32.totalorder %s73, %s75
      %p79 = scmp.eq.s32.totalorder %s18, 0
      %p80 = por %p78, %p79
      %p81 = scmp.ne.s32.totalorder %s73, %s75
      %p82 = scmp.eq.s32.totalorder %s23, 1
      %p83 = por %p81, %p82
      %p84 = scmp.ne.s32.totalorder %s75, %s76
      %p85 = scmp.eq.s32.totalorder %s23, 0
      %p86 = por %p84, %p85
      %p87 = scmp.ne.s32.totalorder %s75, %s76
      %p88 = scmp.eq.s32.totalorder %s24, 1
      %p89 = por %p87, %p88
      %p91 = scmp.ne.s32.totalorder %s76, %s90
      %p92 = scmp.eq.s32.totalorder %s24, 0
      %p93 = por %p91, %p92
      %s95 = sadd.s32 %s94, 1
      %p98 = scmp.eq.s32.totalorder %s18, 1
      %p99 = scmp.ne.s32.totalorder %s94, %s96
      %p100 = scmp.eq.s32.totalorder %s18, 0
      %p101 = por %p99, %p100
      %p102 = scmp.ne.s32.totalorder %s94, %s96
      %p103 = scmp.eq.s32.totalorder %s23, 1
      %p104 = por %p102, %p103
      %p105 = scmp.ne.s32.totalorder %s96, %s97
      %p106 = scmp.eq.s32.totalorder %s23, 0
      %p107 = por %p105, %p106
      %p108 = scmp.ne.s32.totalorder %s96, %s97
      %p109 = scmp.eq.s32.totalorder %s24, 1
      %p110 = por %p108, %p109
      %p112 = scmp.ne.s32.totalorder %s97, %s111
      %p113 = scmp.eq.s32.totalorder %s24, 0
      %p114 = por %p112, %p113
      %s116 = sadd.s32 %s115, 1
      %p119 = scmp.eq.s32.totalorder %s18, 1
      %p120 = scmp.ne.s32.totalorder %s115, %s117
      %p121 = scmp.eq.s32.totalorder %s18, 0
      %p122 = por %p120, %p121
      %p123 = scmp.ne.s32.totalorder %s115, %s117
      %p124 = scmp.eq.s32.totalorder %s23, 1
      %p125 = por %p123, %p124
      %p126 = scmp.ne.s32.totalorder %s117, %s118
      %p127 = scmp.eq.s32.totalorder %s23, 0
      %p128 = por %p126, %p127
      %p129 = scmp.ne.s32.totalorder %s117, %s118
      %p130 = scmp.eq.s32.totalorder %s24, 1
      %p131 = por %p129, %p130
      %p133 = scmp.ne.s32.totalorder %s118, %s132
      %p134 = scmp.eq.s32.totalorder %s24, 0
      %p135 = por %p133, %p134
      %s136 = ssub.s32 %s18, %s25
      %p137 = scmp.eq.s32.totalorder %s136, 0
      %s139 = sadd.s32 %s138, 1
      %s140 = scalar_select %p137, %s138, %s139
      %p143 = pneg %p137
      %p144 = scmp.eq.s32.totalorder %s18, 1
      %p145 = por %p143, %p144
      %p146 = scmp.ne.s32.totalorder %s138, %s141
      %p147 = scmp.eq.s32.totalorder %s18, 0
      %p148 = por %p146, %p147
      %p149 = scmp.ne.s32.totalorder %s138, %s141
      %p150 = scmp.eq.s32.totalorder %s23, 1
      %p151 = por %p149, %p150
      %p152 = scmp.ne.s32.totalorder %s141, %s142
      %p153 = scmp.eq.s32.totalorder %s23, 0
      %p154 = por %p152, %p153
      %p155 = scmp.ne.s32.totalorder %s141, %s142
      %p156 = scmp.eq.s32.totalorder %s24, 1
      %p157 = por %p155, %p156
      %p159 = scmp.ne.s32.totalorder %s142, %s158
      %p160 = scmp.eq.s32.totalorder %s24, 0
      %p161 = por %p159, %p160
      %p162 = scmp.le.s32.totalorder 1, %s18
      %p163 = scmp.lt.s32.totalorder %s18, 3
      %p164 = pnand %p162, %p163
      %p165 = pneg %p164
      // Predicated region
      $region9: #{tpu_custom_call.1} parent=5 // pred_check
        _
      $region10: #{tpu_custom_call.1} parent=5 // pred_check_branch
        %167 = sbr.rel (%p164) target = $region12
      $region11: #{tpu_custom_call.1} parent=5 // pred_region
        %s168 = ssub.s32 %s18, 1
        // Predicated region
        $region13: #{tpu_custom_call.1} parent=11 // pred_check
          %p169 = pneg %p65
        $region14: #{tpu_custom_call.1} parent=11 // pred_check_branch
          %171 = sbr.rel (%p169) target = $region16
        $region15: #{tpu_custom_call.1} parent=11 // pred_region
          %s173 = ssub.s32 128, 128
          %174 = vsyncadd [#allocation6], %s173
          %s176 = sshll.u32 [#allocation5], 4
          %s177 = int_to_ptr.vmem [resolvable:$true] %s176
          %179 = dma.hbm_to_vmem [thread:$0]  %s1, 128, %s177, [#allocation6]
        $region16: #{tpu_custom_call.1} parent=11 // pred_fallthru
          _
        // Predicated region
        $region17: #{tpu_custom_call.1} parent=11 // pred_check
          %p180 = pneg %p86
        $region18: #{tpu_custom_call.1} parent=11 // pred_check_branch
          %182 = sbr.rel (%p180) target = $region20
        $region19: #{tpu_custom_call.1} parent=11 // pred_region
          _
        $region20: #{tpu_custom_call.1} parent=11 // pred_fallthru
          _
        // Predicated region
        $region21: #{tpu_custom_call.1} parent=11 // pred_check
          %p183 = pneg %p107
        $region22: #{tpu_custom_call.1} parent=11 // pred_check_branch
          %185 = sbr.rel (%p183) target = $region24
        $region23: #{tpu_custom_call.1} parent=11 // pred_region
          _
        $region24: #{tpu_custom_call.1} parent=11 // pred_fallthru
          _
        // Predicated region
        $region25: #{tpu_custom_call.1} parent=11 // pred_check
          %p186 = pneg %p128
        $region26: #{tpu_custom_call.1} parent=11 // pred_check_branch
          %188 = sbr.rel (%p186) target = $region28
        $region27: #{tpu_custom_call.1} parent=11 // pred_region
          _
        $region28: #{tpu_custom_call.1} parent=11 // pred_fallthru
          _
      $region12: #{tpu_custom_call.1} parent=5 // pred_fallthru
        _
      %p189 = scmp.lt.s32.totalorder %s18, 2
      // Predicated region
      $region29: #{tpu_custom_call.1} parent=5 // pred_check
        %p190 = pneg %p189
      $region30: #{tpu_custom_call.1} parent=5 // pred_check_branch
        %192 = sbr.rel (%p190) target = $region32
      $region31: #{tpu_custom_call.1} parent=5 // pred_region
        // Predicated region
        $region33: #{tpu_custom_call.1} parent=31 // pred_check
          %p193 = pneg %p38
        $region34: #{tpu_custom_call.1} parent=31 // pred_check_branch
          %195 = sbr.rel (%p193) target = $region36
        $region35: #{tpu_custom_call.1} parent=31 // pred_region
          %s196 = sand.u32 %s28, 1
          %s197 = scalar_lea.sflag [#allocation3], %s196
          %s198 = sand.u32 %s28, 1
          %s199 = smul.addr %s198, 8
          %s200 = scalar_lea.vmem [#allocation2], %s199
          %s202 = ssub.s32 128, 128
          %203 = vsyncadd %s197, %s202
          %s204 = smul.addr %s18, 128
          %s205 = scalar_lea.hbm %s0, %s204
          %s207 = sshll.u32 %s200, 4
          %s208 = int_to_ptr.vmem [resolvable:$true] %s207
          %210 = dma.hbm_to_vmem [thread:$0]  %s205, 128, %s208, %s197
        $region36: #{tpu_custom_call.1} parent=31 // pred_fallthru
          _
      $region32: #{tpu_custom_call.1} parent=5 // pred_fallthru
        _
      %p211 = scmp.le.s32.totalorder 1, %s18
      %p212 = scmp.lt.s32.totalorder %s18, 3
      %p213 = pnand %p211, %p212
      %p214 = pneg %p213
      // Predicated region
      $region37: #{tpu_custom_call.1} parent=5 // pred_check
        _
      $region38: #{tpu_custom_call.1} parent=5 // pred_check_branch
        %216 = sbr.rel (%p213) target = $region40
      $region39: #{tpu_custom_call.1} parent=5 // pred_region
        %s217 = ssub.s32 %s18, 1
        %s218 = sand.u32 %s31, 1
        %s219 = scalar_lea.sflag [#allocation3], %s218
        %s220 = sand.u32 %s31, 1
        %s221 = smul.addr %s220, 8
        %s222 = scalar_lea.vmem [#allocation2], %s221
        // Predicated region
        $region41: #{tpu_custom_call.1} parent=39 // pred_check
          %p223 = pneg %p44
        $region42: #{tpu_custom_call.1} parent=39 // pred_check_branch
          %225 = sbr.rel (%p223) target = $region44
        $region43: #{tpu_custom_call.1} parent=39 // pred_region
          %226 = dma.done %s219, 128
        $region44: #{tpu_custom_call.1} parent=39 // pred_fallthru
          _
        // Predicated region
        $region45: #{tpu_custom_call.1} parent=39 // pred_check
          %p227 = pneg %p65
        $region46: #{tpu_custom_call.1} parent=39 // pred_check_branch
          %229 = sbr.rel (%p227) target = $region48
        $region47: #{tpu_custom_call.1} parent=39 // pred_region
          %230 = dma.done [#allocation6], 128
        $region48: #{tpu_custom_call.1} parent=39 // pred_fallthru
          _
        %s231 = sand.u32 %s31, 1
        %s232 = scalar_lea.sflag [#allocation3], %s231
        %s233 = sand.u32 %s31, 1
        %s234 = smul.addr %s233, 8
        %s235 = scalar_lea.vmem [#allocation2], %s234
        %p236 = pneg %p44
        %p237 = pneg %p41
        %p238 = pneg %p65
        %p239 = pneg %p62
        %p240 = pneg %p86
        %p241 = pneg %p83
        %p242 = pneg %p107
        %p243 = pneg %p104
        %p244 = pneg %p128
        %p245 = pneg %p125
        %p246 = pneg %p154
        %p247 = pneg %p151
        %s248 = sand.u32 %s141, 1
        %s249 = scalar_lea.sflag [#allocation4], %s248
        %s250 = sand.u32 %s141, 1
        %s251 = smul.addr %s250, 8
        %s252 = scalar_lea.vmem [#allocation7], %s251
        %v253 = vld [vmem:[%s222] sm:$0xff]
        %vm254 = vcmask 130048
        %v255 = vsel %vm254, %v253, 0.0
        %256 = vadd.xlane.f32.xlu0 %v255
        %v257 = vpop.xlane.xlu0 %256
        %v258 = vmul.f32 %v257, 0.0625
        %v259 = vld [vmem:[#allocation5] sm:$0xff]
        %v260 = vld [vmem:[%s2] sm:$0x1]
        %v262 = vlaneseq
        %v263 = vand.u32 %v262, 127
        %v264 = vlaneseq
        %v265 = vshrl.u32 %v264, 7
        %v266 = vsub.s32 %v263, %v265
        %v267 = vrot.slane %v258, %v266
        %vm268 = vcmask 64512
        %v269 = vsel %vm268, %v267, 0
        %271 = vmatprep.subr.mxu0 0.0
        %272 = vmatpush1.msra.mxu0 %v259
        %273 = vmatprep.subr.mxu0 0.0
        %274 = vmatpush1.msra.mxu0 0.0
        %275 = vmatprep.subr.mxu0 0.0
        %276 = vmatpush1.msra.mxu0 0.0
        %277 = vmatprep.subr.mxu0 0.0
        %278 = vmatpush1.msra.mxu0 0.0
        %279 = vmatprep.subr.mxu0 0.0
        %280 = vmatpush1.msra.mxu0 0.0
        %281 = vmatprep.subr.mxu0 0.0
        %282 = vmatpush1.msra.mxu0 0.0
        %283 = vmatprep.subr.mxu0 0.0
        %284 = vmatpush1.msra.mxu0 0.0
        %285 = vmatprep.subr.mxu0 0.0
        %286 = vmatpush1.msra.mxu0 0.0
        %287 = vmatprep.subr.mxu0 0.0
        %288 = vmatpush1.msra.mxu0 0.0
        %289 = vmatprep.subr.mxu0 0.0
        %290 = vmatpush1.msra.mxu0 0.0
        %291 = vmatprep.subr.mxu0 0.0
        %292 = vmatpush1.msra.mxu0 0.0
        %293 = vmatprep.subr.mxu0 0.0
        %294 = vmatpush1.msra.mxu0 0.0
        %295 = vmatprep.subr.mxu0 0.0
        %296 = vmatpush1.msra.mxu0 0.0
        %297 = vmatprep.subr.mxu0 0.0
        %298 = vmatpush1.msra.mxu0 0.0
        %299 = vmatprep.subr.mxu0 0.0
        %300 = vmatpush1.msra.mxu0 0.0
        %301 = vmatprep.subr.mxu0 0.0
        %302 = vmatpush1.msra.mxu0 0.0
        %303 = vmatprep.subr.mxu0 0.0
        %304 = vmatpush1.msra.mxu0 0.0
        %305 = vmatprep.subr.mxu0 0.0
        %306 = vmatpush1.msra.mxu0 0.0
        %307 = vmatprep.subr.mxu0 0.0
        %308 = vmatpush1.msra.mxu0 0.0
        %309 = vmatprep.subr.mxu0 0.0
        %310 = vmatpush1.msra.mxu0 0.0
        %311 = vmatprep.subr.mxu0 0.0
        %312 = vmatpush1.msra.mxu0 0.0
        %313 = vmatprep.subr.mxu0 0.0
        %314 = vmatpush1.msra.mxu0 0.0
        %315 = vmatprep.subr.mxu0 0.0
        %316 = vmatpush1.msra.mxu0 0.0
        %317 = vmatprep.subr.mxu0 0.0
        %318 = vmatpush1.msra.mxu0 0.0
        %319 = vmatprep.subr.mxu0 0.0
        %320 = vmatpush1.msra.mxu0 0.0
        %321 = vmatprep.subr.mxu0 0.0
        %322 = vmatpush1.msra.mxu0 0.0
        %323 = vmatprep.subr.mxu0 0.0
        %324 = vmatpush1.msra.mxu0 0.0
        %325 = vmatprep.subr.mxu0 0.0
        %326 = vmatpush1.msra.mxu0 0.0
        %327 = vmatprep.subr.mxu0 0.0
        %328 = vmatpush1.msra.mxu0 0.0
        %329 = vmatprep.subr.mxu0 0.0
        %330 = vmatpush1.msra.mxu0 0.0
        %331 = vmatprep.subr.mxu0 0.0
        %332 = vmatpush1.msra.mxu0 0.0
        %333 = vmatprep.subr.mxu0 0.0
        %334 = vmatpush1.msra.mxu0 0.0
        %335 = vmatprep.mubr.f32.mxu0 0.0
        %336 = vmatmul.mubr.f32.gmra.mrb[0].mxu0 %v269
        %v337 = vpop.f32.mrb[0].mxu0
        %v338 = vadd.f32 %v260, %v337
        %v339 = vpop.f32.mrb[0].mxu0
        %340 = vdwg.mxu0
        %v341 = vxor.u32 %v338, 2147483648
        %v342 = vmul.f32 %v341, 1.442695
        %v343 = vpow.pop %v342
        %v344 = vadd.f32 %v343, 1.0
        %v345 = vrcp.pop %v344
        %v346 = vmul.f32 1.0, %v345
        %v347 = vld [vmem:[%s3] sm:$0xff]
        %v348 = vld [vmem:[%s4] sm:$0x1]
        %v350 = vsel %vm268, %v346, 0
        %352 = vmatprep.subr.mxu0 0.0
        %353 = vmatpush1.msra.mxu0 %v347
        %354 = vmatprep.subr.mxu0 0.0
        %355 = vmatpush1.msra.mxu0 0.0
        %356 = vmatprep.subr.mxu0 0.0
        %357 = vmatpush1.msra.mxu0 0.0
        %358 = vmatprep.subr.mxu0 0.0
        %359 = vmatpush1.msra.mxu0 0.0
        %360 = vmatprep.subr.mxu0 0.0
        %361 = vmatpush1.msra.mxu0 0.0
        %362 = vmatprep.subr.mxu0 0.0
        %363 = vmatpush1.msra.mxu0 0.0
        %364 = vmatprep.subr.mxu0 0.0
        %365 = vmatpush1.msra.mxu0 0.0
        %366 = vmatprep.subr.mxu0 0.0
        %367 = vmatpush1.msra.mxu0 0.0
        %368 = vmatprep.subr.mxu0 0.0
        %369 = vmatpush1.msra.mxu0 0.0
        %370 = vmatprep.subr.mxu0 0.0
        %371 = vmatpush1.msra.mxu0 0.0
        %372 = vmatprep.subr.mxu0 0.0
        %373 = vmatpush1.msra.mxu0 0.0
        %374 = vmatprep.subr.mxu0 0.0
        %375 = vmatpush1.msra.mxu0 0.0
        %376 = vmatprep.subr.mxu0 0.0
        %377 = vmatpush1.msra.mxu0 0.0
        %378 = vmatprep.subr.mxu0 0.0
        %379 = vmatpush1.msra.mxu0 0.0
        %380 = vmatprep.subr.mxu0 0.0
        %381 = vmatpush1.msra.mxu0 0.0
        %382 = vmatprep.subr.mxu0 0.0
        %383 = vmatpush1.msra.mxu0 0.0
        %384 = vmatprep.subr.mxu0 0.0
        %385 = vmatpush1.msra.mxu0 0.0
        %386 = vmatprep.subr.mxu0 0.0
        %387 = vmatpush1.msra.mxu0 0.0
        %388 = vmatprep.subr.mxu0 0.0
        %389 = vmatpush1.msra.mxu0 0.0
        %390 = vmatprep.subr.mxu0 0.0
        %391 = vmatpush1.msra.mxu0 0.0
        %392 = vmatprep.subr.mxu0 0.0
        %393 = vmatpush1.msra.mxu0 0.0
        %394 = vmatprep.subr.mxu0 0.0
        %395 = vmatpush1.msra.mxu0 0.0
        %396 = vmatprep.subr.mxu0 0.0
        %397 = vmatpush1.msra.mxu0 0.0
        %398 = vmatprep.subr.mxu0 0.0
        %399 = vmatpush1.msra.mxu0 0.0
        %400 = vmatprep.subr.mxu0 0.0
        %401 = vmatpush1.msra.mxu0 0.0
        %402 = vmatprep.subr.mxu0 0.0
        %403 = vmatpush1.msra.mxu0 0.0
        %404 = vmatprep.subr.mxu0 0.0
        %405 = vmatpush1.msra.mxu0 0.0
        %406 = vmatprep.subr.mxu0 0.0
        %407 = vmatpush1.msra.mxu0 0.0
        %408 = vmatprep.subr.mxu0 0.0
        %409 = vmatpush1.msra.mxu0 0.0
        %410 = vmatprep.subr.mxu0 0.0
        %411 = vmatpush1.msra.mxu0 0.0
        %412 = vmatprep.subr.mxu0 0.0
        %413 = vmatpush1.msra.mxu0 0.0
        %414 = vmatprep.subr.mxu0 0.0
        %415 = vmatpush1.msra.mxu0 0.0
        %416 = vmatprep.mubr.f32.mxu0 0.0
        %417 = vmatmul.mubr.f32.gmra.mrb[0].mxu0 %v350
        %v418 = vpop.f32.mrb[0].mxu0
        %v419 = vadd.f32 %v348, %v418
        %v420 = vpop.f32.mrb[0].mxu0
        %421 = vdwg.mxu0
        %v422 = vxor.u32 %v419, 2147483648
        %v423 = vmul.f32 %v422, 1.442695
        %v424 = vpow.pop %v423
        %v425 = vadd.f32 %v424, 1.0
        %v426 = vrcp.pop %v425
        %v427 = vmul.f32 1.0, %v426
        %v428 = vlaneseq
        %v429 = vshrl.u32 %v428, 7
        %v430 = vsub.s32 0, %v429
        %v431 = vrot.slane %v427, %v430
        %433 = vbcast.lane.b32.xlu0 %v431, 256
        %v434 = vpop.permute.xlu0 %433
        %v435 = vmul.f32 %v253, %v434
        %436 = vst.msk [vmem:[%s252] sm:$0xff] %vm254, %v435
        %s437 = sand.u32 %s141, 1
        %s438 = scalar_lea.sflag [#allocation4], %s437
        %s439 = sand.u32 %s141, 1
        %s440 = smul.addr %s439, 8
        %s441 = scalar_lea.vmem [#allocation7], %s440
        // Predicated region
        $region49: #{tpu_custom_call.1} parent=39 // pred_check
          %p442 = pneg %p151
        $region50: #{tpu_custom_call.1} parent=39 // pred_check_branch
          %444 = sbr.rel (%p442) target = $region52
        $region51: #{tpu_custom_call.1} parent=39 // pred_region
          %s446 = ssub.s32 128, 128
          %447 = vsyncadd %s438, %s446
          %s448 = smul.addr %s23, 128
          %s449 = scalar_lea.hbm %s5, %s448
          %s451 = sshll.u32 %s441, 4
          %s452 = int_to_ptr.vmem [resolvable:$true] %s451
          %454 = dma.vmem_to_hbm [thread:$0]  %s452, 128, %s449, %s438
        $region52: #{tpu_custom_call.1} parent=39 // pred_fallthru
          _
      $region40: #{tpu_custom_call.1} parent=5 // pred_fallthru
        _
      %p455 = scmp.le.s32.totalorder 2, %s18
      // Predicated region
      $region53: #{tpu_custom_call.1} parent=5 // pred_check
        %p456 = pneg %p455
      $region54: #{tpu_custom_call.1} parent=5 // pred_check_branch
        %458 = sbr.rel (%p456) target = $region56
      $region55: #{tpu_custom_call.1} parent=5 // pred_region
        %s459 = ssub.s32 %s18, 2
        // Predicated region
        $region57: #{tpu_custom_call.1} parent=55 // pred_check
          %p460 = pneg %p157
        $region58: #{tpu_custom_call.1} parent=55 // pred_check_branch
          %462 = sbr.rel (%p460) target = $region60
        $region59: #{tpu_custom_call.1} parent=55 // pred_region
          %s463 = sand.u32 %s142, 1
          %s464 = scalar_lea.sflag [#allocation4], %s463
          %s465 = sand.u32 %s142, 1
          %s466 = smul.addr %s465, 8
          %s467 = scalar_lea.vmem [#allocation7], %s466
          %468 = dma.done %s464, 128
        $region60: #{tpu_custom_call.1} parent=55 // pred_fallthru
          _
      $region56: #{tpu_custom_call.1} parent=5 // pred_fallthru
        _
    $region6: #{tpu_custom_call.1} parent=1 // loop_footer
      %s22 = sadd.s32 1, %s18
    $region7: #{tpu_custom_call.1} parent=1 // loop_footer_branch
      %17 = sbr.rel target = $region3
    $region8: #{tpu_custom_call.1} parent=1 // loop_exit
      _
    %469 = vsyncpa [#allocation3], 1
    %s470 = scalar_lea.sflag [#allocation3], 1
    %471 = vsyncpa %s470, 1
    %472 = vsyncpa [#allocation6], 1
    %473 = vsyncpa [#allocation4], 1
    %s474 = scalar_lea.sflag [#allocation4], 1
    %475 = vsyncpa %s474, 1

</llo_original>
